<compile_context>
chip_gen: v7x
topology: tpu7x:2x2x1
jax: 0.10.0
libtpu: 0.0.40
codegen_flags: <defaults>
</compile_context>

<pallas_src>
import functools

import jax
import jax.numpy as jnp
from jax.experimental import pallas as pl
from jax.experimental.pallas import tpu as pltpu


D_IN = 310
D_H1, D_H2, D_H3 = 256, 128, 64
D_H3_PAD = 128          # hidden-3 features padded 64 -> 128 (lane-dense)
D_OUT_PAD = 128         # classifier lanes padded to 128 (unmasked vst)


def _leaky_relu(x, slope=0.01):
    return jnp.where(x > 0, x, slope * x)


def dan_kernel(x_ref,
               w1_ref, b1_ref,
               w2_ref, b2_ref,
               w3_ref, b3_ref,
               wc_ref, bc_ref,
               cls_ref):
    # bf16 operands on the MXU, f32 accumulation; bias + LeakyReLU stay f32 (VPU).
    x = x_ref[...].astype(jnp.bfloat16)                              # (TB, 310)
    h1 = jnp.dot(x, w1_ref[...], preferred_element_type=jnp.float32) + b1_ref[...]
    h1 = _leaky_relu(h1).astype(jnp.bfloat16)                        # (TB, 256)
    h2 = jnp.dot(h1, w2_ref[...], preferred_element_type=jnp.float32) + b2_ref[...]
    h2 = _leaky_relu(h2).astype(jnp.bfloat16)                        # (TB, 128)
    h3 = jnp.dot(h2, w3_ref[...], preferred_element_type=jnp.float32) + b3_ref[...]
    h3 = _leaky_relu(h3).astype(jnp.bfloat16)                        # (TB, 128) padded feats
    cls = jnp.dot(h3, wc_ref[...], preferred_element_type=jnp.float32) + bc_ref[...]
    cls_ref[...] = cls.astype(cls_ref.dtype)                         # (TB, 128) bf16


def _round_up(n, m):
    return (n + m - 1) // m * m


@functools.partial(jax.jit, static_argnames=("block_b",))
def dan_forward(data_src, params, block_b=2048):
    """Eval-mode DAN forward. Returns (data_src_cls, loss)."""
    (w1, b1, w2, b2, w3, b3, wc, bc) = params
    B = data_src.shape[0]
    num_cat = wc.shape[1]

    # ---- batch tiling: balanced tiles; >= 2 grid steps so v7x's 2 TCs both work.
    n_tiles = pl.cdiv(B, block_b)
    if B >= 16:
        n_tiles = max(n_tiles, 2)
    if n_tiles == 1:
        tb = B                                    # block == full array dims
    else:
        tb = _round_up(pl.cdiv(B, n_tiles), 16)   # 16: bf16 sublane packing
    grid = (pl.cdiv(B, tb),)

    # ---- weights: cast to bf16 once (tiny); pad hidden-3 and classifier lanes
    # with zeros (math unchanged: LeakyReLU(0)=0, zero rows contribute nothing).
    w1b = w1.astype(jnp.bfloat16)                                     # (310, 256)
    w2b = w2.astype(jnp.bfloat16)                                     # (256, 128)
    w3p = jnp.zeros((D_H2, D_H3_PAD), jnp.bfloat16).at[:, :D_H3].set(
        w3.astype(jnp.bfloat16))                                      # (128, 128)
    wcp = jnp.zeros((D_H3_PAD, D_OUT_PAD), jnp.bfloat16).at[:D_H3, :num_cat].set(
        wc.astype(jnp.bfloat16))                                      # (128, 128)

    b1f = b1.astype(jnp.float32).reshape(1, D_H1)
    b2f = b2.astype(jnp.float32).reshape(1, D_H2)
    b3p = jnp.zeros((1, D_H3_PAD), jnp.float32).at[:, :D_H3].set(
        b3.astype(jnp.float32).reshape(1, D_H3))
    bcp = jnp.zeros((1, D_OUT_PAD), jnp.float32).at[:, :num_cat].set(
        bc.astype(jnp.float32).reshape(1, num_cat))

    def const_spec(shape):
        # Same block every grid step -> DMA'd once, resident in VMEM.
        return pl.BlockSpec(shape, lambda i: (0, 0))

    cls_pad = pl.pallas_call(
        dan_kernel,
        out_shape=jax.ShapeDtypeStruct((B, D_OUT_PAD), jnp.bfloat16),
        grid=grid,
        in_specs=[
            # x: unpadded f32 straight from HBM; last dim == full array dim.
            pl.BlockSpec((tb, D_IN), lambda i: (i, 0)),
            const_spec((D_IN, D_H1)),       const_spec((1, D_H1)),
            const_spec((D_H1, D_H2)),       const_spec((1, D_H2)),
            const_spec((D_H2, D_H3_PAD)),   const_spec((1, D_H3_PAD)),
            const_spec((D_H3_PAD, D_OUT_PAD)), const_spec((1, D_OUT_PAD)),
        ],
        out_specs=pl.BlockSpec((tb, D_OUT_PAD), lambda i: (i, 0)),
        compiler_params=pltpu.CompilerParams(
            dimension_semantics=("parallel",),
            vmem_limit_bytes=32 * 1024 * 1024),
    )(data_src, w1b, b1f, w2b, b2f, w3p, b3p, wcp, bcp)

    cls = cls_pad[:, :num_cat].astype(jnp.float32)
    loss = jnp.float32(0.0)  # eval mode: no MMD term
    return cls, loss


def dan_reference(data_src, params):
    """Pure-JAX f32 reference of the eval-mode forward."""
    (w1, b1, w2, b2, w3, b3, wc, bc) = params
    h = data_src.astype(jnp.float32)
    for w, b in ((w1, b1), (w2, b2), (w3, b3)):
        h = h @ w + b
        h = jnp.where(h > 0, h, 0.01 * h)
    return h @ wc + bc


def init_params(key, number_of_category=4):
    """Deterministic synthetic params matching nn.Linear shapes.

    Stored as (in, out); PyTorch stores (out, in) — transposed equivalently.
    """
    dims = [(310, 256), (256, 128), (128, 64), (64, number_of_category)]
    params = []
    for (fin, fout) in dims:
        key, kw, kb = jax.random.split(key, 3)
        bound = 1.0 / jnp.sqrt(fin)
        w = jax.random.uniform(kw, (fin, fout), jnp.float32, -bound, bound)
        b = jax.random.uniform(kb, (1, fout), jnp.float32, -bound, bound)
        params += [w, b]
    return tuple(params)


if __name__ == "__main__":
    key = jax.random.PRNGKey(0)
    kx, kp = jax.random.split(key)

    batch = 40   # small, but exercises the 2-tile grid with a partial last tile
    data_src = jax.random.normal(kx, (batch, 310), jnp.float32)
    params = init_params(kp, number_of_category=4)

    cls_out, loss = dan_forward(data_src, params)
    cls_out = jax.block_until_ready(cls_out)
    loss = jax.block_until_ready(loss)

    assert cls_out.shape == (batch, 4)
    assert cls_out.dtype == jnp.float32
    assert bool(jnp.all(jnp.isfinite(cls_out)))

    ref = dan_reference(data_src, params)
    max_err = float(jnp.max(jnp.abs(cls_out - ref)))
    assert max_err < 1e-1, f"max abs err vs f32 reference: {max_err}"

    print("KERNEL_OK")
</pallas_src>

<mosaic_0001>
module attributes {stable_mosaic.version = 11 : i64} {
  func.func @dan_kernel(%arg0: i32, %arg1: memref<32x310xf32, #tpu.memory_space<vmem>>, %arg2: memref<310x256xbf16, #tpu.memory_space<vmem>>, %arg3: memref<1x256xf32, #tpu.memory_space<vmem>>, %arg4: memref<256x128xbf16, #tpu.memory_space<vmem>>, %arg5: memref<1x128xf32, #tpu.memory_space<vmem>>, %arg6: memref<128x128xbf16, #tpu.memory_space<vmem>>, %arg7: memref<1x128xf32, #tpu.memory_space<vmem>>, %arg8: memref<128x128xbf16, #tpu.memory_space<vmem>>, %arg9: memref<1x128xf32, #tpu.memory_space<vmem>>, %arg10: memref<32x128xbf16, #tpu.memory_space<vmem>>) attributes {dimension_semantics = [#tpu.dimension_semantics<parallel>], iteration_bounds = array<i64: 2>, scalar_prefetch = 0 : i64, scratch_operands = 0 : i64, tpu.core_type = #tpu.core_type<tc>, window_params = [{transform_indices = @transform_0, window_bounds = array<i64: 32, 310>}, {pipeline_mode = #tpu.pipeline_mode<synchronous>, transform_indices = @transform_1, window_bounds = array<i64: 310, 256>}, {pipeline_mode = #tpu.pipeline_mode<synchronous>, transform_indices = @transform_2, window_bounds = array<i64: 1, 256>}, {pipeline_mode = #tpu.pipeline_mode<synchronous>, transform_indices = @transform_3, window_bounds = array<i64: 256, 128>}, {pipeline_mode = #tpu.pipeline_mode<synchronous>, transform_indices = @transform_4, window_bounds = array<i64: 1, 128>}, {pipeline_mode = #tpu.pipeline_mode<synchronous>, transform_indices = @transform_5, window_bounds = array<i64: 128, 128>}, {pipeline_mode = #tpu.pipeline_mode<synchronous>, transform_indices = @transform_6, window_bounds = array<i64: 1, 128>}, {pipeline_mode = #tpu.pipeline_mode<synchronous>, transform_indices = @transform_7, window_bounds = array<i64: 128, 128>}, {pipeline_mode = #tpu.pipeline_mode<synchronous>, transform_indices = @transform_8, window_bounds = array<i64: 1, 128>}, {transform_indices = @transform_9, window_bounds = array<i64: 32, 128>}]} {
    %c0 = arith.constant 0 : index
    %c0_0 = arith.constant 0 : index
    %0 = vector.load %arg1[%c0, %c0_0] : memref<32x310xf32, #tpu.memory_space<vmem>>, vector<32x310xf32>
    %1 = arith.truncf %0 : vector<32x310xf32> to vector<32x310xbf16>
    %c0_1 = arith.constant 0 : index
    %c0_2 = arith.constant 0 : index
    %2 = vector.load %arg2[%c0_1, %c0_2] : memref<310x256xbf16, #tpu.memory_space<vmem>>, vector<310x256xbf16>
    %cst = arith.constant dense<0.000000e+00> : vector<32x256xf32>
    %3 = tpu.matmul %1, %2, %cst {dimension_numbers = #tpu.dot_dimension_numbers<[1], [0], [0], [1], [0, 0, 1, 1], [], []>} : vector<32x310xbf16>, vector<310x256xbf16>, vector<32x256xf32> -> vector<32x256xf32>
    %c0_3 = arith.constant 0 : index
    %c0_4 = arith.constant 0 : index
    %4 = vector.load %arg3[%c0_3, %c0_4] : memref<1x256xf32, #tpu.memory_space<vmem>>, vector<1x256xf32>
    %5 = vector.broadcast %4 : vector<1x256xf32> to vector<32x256xf32>
    %6 = arith.addf %3, %5 : vector<32x256xf32>
    %cst_5 = arith.constant 0.000000e+00 : f32
    %7 = vector.broadcast %cst_5 : f32 to vector<32x256xf32>
    %8 = arith.cmpf ogt, %6, %7 : vector<32x256xf32>
    %cst_6 = arith.constant 0.00999999977 : f32
    %9 = vector.broadcast %cst_6 : f32 to vector<32x256xf32>
    %10 = arith.mulf %9, %6 : vector<32x256xf32>
    %11 = arith.select %8, %6, %10 : vector<32x256xi1>, vector<32x256xf32>
    %12 = arith.truncf %11 : vector<32x256xf32> to vector<32x256xbf16>
    %c0_7 = arith.constant 0 : index
    %c0_8 = arith.constant 0 : index
    %13 = vector.load %arg4[%c0_7, %c0_8] : memref<256x128xbf16, #tpu.memory_space<vmem>>, vector<256x128xbf16>
    %cst_9 = arith.constant dense<0.000000e+00> : vector<32x128xf32>
    %14 = tpu.matmul %12, %13, %cst_9 {dimension_numbers = #tpu.dot_dimension_numbers<[1], [0], [0], [1], [0, 0, 1, 1], [], []>} : vector<32x256xbf16>, vector<256x128xbf16>, vector<32x128xf32> -> vector<32x128xf32>
    %c0_10 = arith.constant 0 : index
    %c0_11 = arith.constant 0 : index
    %15 = vector.load %arg5[%c0_10, %c0_11] : memref<1x128xf32, #tpu.memory_space<vmem>>, vector<1x128xf32>
    %16 = vector.broadcast %15 : vector<1x128xf32> to vector<32x128xf32>
    %17 = arith.addf %14, %16 : vector<32x128xf32>
    %cst_12 = arith.constant 0.000000e+00 : f32
    %18 = vector.broadcast %cst_12 : f32 to vector<32x128xf32>
    %19 = arith.cmpf ogt, %17, %18 : vector<32x128xf32>
    %cst_13 = arith.constant 0.00999999977 : f32
    %20 = vector.broadcast %cst_13 : f32 to vector<32x128xf32>
    %21 = arith.mulf %20, %17 : vector<32x128xf32>
    %22 = arith.select %19, %17, %21 : vector<32x128xi1>, vector<32x128xf32>
    %23 = arith.truncf %22 : vector<32x128xf32> to vector<32x128xbf16>
    %c0_14 = arith.constant 0 : index
    %c0_15 = arith.constant 0 : index
    %24 = vector.load %arg6[%c0_14, %c0_15] : memref<128x128xbf16, #tpu.memory_space<vmem>>, vector<128x128xbf16>
    %cst_16 = arith.constant dense<0.000000e+00> : vector<32x128xf32>
    %25 = tpu.matmul %23, %24, %cst_16 {dimension_numbers = #tpu.dot_dimension_numbers<[1], [0], [0], [1], [0, 0, 1, 1], [], []>} : vector<32x128xbf16>, vector<128x128xbf16>, vector<32x128xf32> -> vector<32x128xf32>
    %c0_17 = arith.constant 0 : index
    %c0_18 = arith.constant 0 : index
    %26 = vector.load %arg7[%c0_17, %c0_18] : memref<1x128xf32, #tpu.memory_space<vmem>>, vector<1x128xf32>
    %27 = vector.broadcast %26 : vector<1x128xf32> to vector<32x128xf32>
    %28 = arith.addf %25, %27 : vector<32x128xf32>
    %cst_19 = arith.constant 0.000000e+00 : f32
    %29 = vector.broadcast %cst_19 : f32 to vector<32x128xf32>
    %30 = arith.cmpf ogt, %28, %29 : vector<32x128xf32>
    %cst_20 = arith.constant 0.00999999977 : f32
    %31 = vector.broadcast %cst_20 : f32 to vector<32x128xf32>
    %32 = arith.mulf %31, %28 : vector<32x128xf32>
    %33 = arith.select %30, %28, %32 : vector<32x128xi1>, vector<32x128xf32>
    %34 = arith.truncf %33 : vector<32x128xf32> to vector<32x128xbf16>
    %c0_21 = arith.constant 0 : index
    %c0_22 = arith.constant 0 : index
    %35 = vector.load %arg8[%c0_21, %c0_22] : memref<128x128xbf16, #tpu.memory_space<vmem>>, vector<128x128xbf16>
    %cst_23 = arith.constant dense<0.000000e+00> : vector<32x128xf32>
    %36 = tpu.matmul %34, %35, %cst_23 {dimension_numbers = #tpu.dot_dimension_numbers<[1], [0], [0], [1], [0, 0, 1, 1], [], []>} : vector<32x128xbf16>, vector<128x128xbf16>, vector<32x128xf32> -> vector<32x128xf32>
    %c0_24 = arith.constant 0 : index
    %c0_25 = arith.constant 0 : index
    %37 = vector.load %arg9[%c0_24, %c0_25] : memref<1x128xf32, #tpu.memory_space<vmem>>, vector<1x128xf32>
    %38 = vector.broadcast %37 : vector<1x128xf32> to vector<32x128xf32>
    %39 = arith.addf %36, %38 : vector<32x128xf32>
    %40 = arith.truncf %39 : vector<32x128xf32> to vector<32x128xbf16>
    %c0_26 = arith.constant 0 : index
    %c0_27 = arith.constant 0 : index
    %41 = vector.load %arg10[%c0_26, %c0_27] : memref<32x128xbf16, #tpu.memory_space<vmem>>, vector<32x128xbf16>
    tpu.vector_store %arg10[%c0_26, %c0_27], %40 {strides = array<i32>} : memref<32x128xbf16, #tpu.memory_space<vmem>>, vector<32x128xbf16>,
    return
  }
  func.func @transform_0(%arg0: i32) -> (i32, i32) {
    %c0_i32 = arith.constant 0 : i32
    %c0_i32_0 = arith.constant 0 : i32
    return %arg0, %c0_i32 : i32, i32
  }
  func.func @transform_1(%arg0: i32) -> (i32, i32) {
    %c0_i32 = arith.constant 0 : i32
    %c0_i32_0 = arith.constant 0 : i32
    %c0_i32_1 = arith.constant 0 : i32
    return %c0_i32, %c0_i32_0 : i32, i32
  }
  func.func @transform_2(%arg0: i32) -> (i32, i32) {
    %c0_i32 = arith.constant 0 : i32
    %c0_i32_0 = arith.constant 0 : i32
    %c0_i32_1 = arith.constant 0 : i32
    return %c0_i32, %c0_i32_0 : i32, i32
  }
  func.func @transform_3(%arg0: i32) -> (i32, i32) {
    %c0_i32 = arith.constant 0 : i32
    %c0_i32_0 = arith.constant 0 : i32
    %c0_i32_1 = arith.constant 0 : i32
    return %c0_i32, %c0_i32_0 : i32, i32
  }
  func.func @transform_4(%arg0: i32) -> (i32, i32) {
    %c0_i32 = arith.constant 0 : i32
    %c0_i32_0 = arith.constant 0 : i32
    %c0_i32_1 = arith.constant 0 : i32
    return %c0_i32, %c0_i32_0 : i32, i32
  }
  func.func @transform_5(%arg0: i32) -> (i32, i32) {
    %c0_i32 = arith.constant 0 : i32
    %c0_i32_0 = arith.constant 0 : i32
    %c0_i32_1 = arith.constant 0 : i32
    return %c0_i32, %c0_i32_0 : i32, i32
  }
  func.func @transform_6(%arg0: i32) -> (i32, i32) {
    %c0_i32 = arith.constant 0 : i32
    %c0_i32_0 = arith.constant 0 : i32
    %c0_i32_1 = arith.constant 0 : i32
    return %c0_i32, %c0_i32_0 : i32, i32
  }
  func.func @transform_7(%arg0: i32) -> (i32, i32) {
    %c0_i32 = arith.constant 0 : i32
    %c0_i32_0 = arith.constant 0 : i32
    %c0_i32_1 = arith.constant 0 : i32
    return %c0_i32, %c0_i32_0 : i32, i32
  }
  func.func @transform_8(%arg0: i32) -> (i32, i32) {
    %c0_i32 = arith.constant 0 : i32
    %c0_i32_0 = arith.constant 0 : i32
    %c0_i32_1 = arith.constant 0 : i32
    return %c0_i32, %c0_i32_0 : i32, i32
  }
  func.func @transform_9(%arg0: i32) -> (i32, i32) {
    %c0_i32 = arith.constant 0 : i32
    %c0_i32_0 = arith.constant 0 : i32
    return %arg0, %c0_i32 : i32, i32
  }
}

</mosaic_0001>

<llo_original>
// kernel: dan_forward.1
$region0: #{dan_forward.1}
  #allocation0 [shape = 'u32[]', space=smem, size = 0x4, offset = 0x4, fixed_abs, tag = 'smem constant byte address 0x4 - core index']
  #allocation1 [shape = 'u32[144,128]{1,0:T(1,128)}', space=vmem, size = 0x12000, scoped, tag = 'internal scratch']
  %s0 = inlined_call_operand.vmem [shape: f32[40,310], index: 0, kind: input, shape index: {}]
  %s1 = inlined_call_operand.vmem [shape: bf16[310,256], index: 1, kind: input, shape index: {}]
  %s2 = inlined_call_operand.vmem [shape: f32[1,256], index: 2, kind: input, shape index: {}]
  %s3 = inlined_call_operand.vmem [shape: bf16[256,128], index: 3, kind: input, shape index: {}]
  %s4 = inlined_call_operand.vmem [shape: f32[1,128], index: 4, kind: input, shape index: {}]
  %s5 = inlined_call_operand.vmem [shape: bf16[128,128], index: 5, kind: input, shape index: {}]
  %s6 = inlined_call_operand.vmem [shape: f32[1,128], index: 6, kind: input, shape index: {}]
  %s7 = inlined_call_operand.vmem [shape: bf16[128,128], index: 7, kind: input, shape index: {}]
  %s8 = inlined_call_operand.vmem [shape: f32[1,128], index: 8, kind: input, shape index: {}]
  %s9 = inlined_call_operand.vmem [shape: bf16[40,128], index: 9, kind: output, shape index: {}]
  %s10 = sld [smem:[#allocation0]]
  $region113: #{dan_forward.1} parent=0
    _
  %s12 = ssub.s32 1, %s10
  %s13 = scalar_select 0, %s12, %s10
  $region1: #{dan_forward.1} parent=0
    #allocation2 [shape = 'u8[16384]{0}', space=vmem, size = 0x4000, scoped, tag = 'output window, operand 0']
    loop: start=0, step=1, limit=4
    $region2: #{dan_forward.1} parent=1 // loop_pre_header
      _
    $region3: #{dan_forward.1} parent=1 // loop_header
      %s15 = sphi 0, %s19
      %p16 = scmp.ge.s32.totalorder %s15, 4
      %s25 = sphi 0, %s27
      %s28 = sphi 0, %s25
      %s29 = sphi 0, %s28
      %s45 = sphi 0, %s29
      %s49 = sphi 0, %s49
      %s51 = sphi 0, %s49
      %s52 = sphi 0, %s51
      %s66 = sphi 0, %s52
      %s70 = sphi 0, %s70
      %s72 = sphi 0, %s70
      %s73 = sphi 0, %s72
      %s87 = sphi 0, %s73
      %s91 = sphi 0, %s91
      %s93 = sphi 0, %s91
      %s94 = sphi 0, %s93
      %s108 = sphi 0, %s94
      %s112 = sphi 0, %s112
      %s114 = sphi 0, %s112
      %s115 = sphi 0, %s114
      %s129 = sphi 0, %s115
      %s133 = sphi 0, %s133
      %s135 = sphi 0, %s133
      %s136 = sphi 0, %s135
      %s150 = sphi 0, %s136
      %s154 = sphi 0, %s154
      %s156 = sphi 0, %s154
      %s157 = sphi 0, %s156
      %s171 = sphi 0, %s157
      %s175 = sphi 0, %s175
      %s177 = sphi 0, %s175
      %s178 = sphi 0, %s177
      %s192 = sphi 0, %s178
      %s196 = sphi 0, %s196
      %s198 = sphi 0, %s196
      %s199 = sphi 0, %s198
      %s213 = sphi 0, %s199
      %s219 = sphi 0, %s221
      %s222 = sphi 0, %s219
      %s223 = sphi 0, %s222
      %s239 = sphi 0, %s223
    $region4: #{dan_forward.1} parent=1 // loop_header_branch
      %18 = sbr.rel (%p16) target = $region8
    $region5: #{dan_forward.1} parent=1 // loop_body
      %s20 = ssub.s32 %s15, 1
      %s21 = ssub.s32 %s15, 2
      %s22 = sadd.s32 %s15, 1
      %s23 = ssub.s32 %s15, %s22
      %p24 = scmp.eq.s32.totalorder %s23, 0
      %s26 = sadd.s32 %s25, 1
      %s27 = scalar_select %p24, %s25, %s26
      %p30 = pneg %p24
      %p31 = scmp.eq.s32.totalorder %s15, 1
      %p32 = por %p30, %p31
      %p33 = scmp.ne.s32.totalorder %s25, %s28
      %p34 = scmp.eq.s32.totalorder %s15, 0
      %p35 = por %p33, %p34
      %p36 = scmp.ne.s32.totalorder %s25, %s28
      %p37 = scmp.eq.s32.totalorder %s20, 1
      %p38 = por %p36, %p37
      %p39 = scmp.ne.s32.totalorder %s28, %s29
      %p40 = scmp.eq.s32.totalorder %s20, 0
      %p41 = por %p39, %p40
      %p42 = scmp.ne.s32.totalorder %s28, %s29
      %p43 = scmp.eq.s32.totalorder %s21, 1
      %p44 = por %p42, %p43
      %p46 = scmp.ne.s32.totalorder %s29, %s45
      %p47 = scmp.eq.s32.totalorder %s21, 0
      %p48 = por %p46, %p47
      %s50 = sadd.s32 %s49, 1
      %p53 = scmp.eq.s32.totalorder %s15, 1
      %p54 = scmp.ne.s32.totalorder %s49, %s51
      %p55 = scmp.eq.s32.totalorder %s15, 0
      %p56 = por %p54, %p55
      %p57 = scmp.ne.s32.totalorder %s49, %s51
      %p58 = scmp.eq.s32.totalorder %s20, 1
      %p59 = por %p57, %p58
      %p60 = scmp.ne.s32.totalorder %s51, %s52
      %p61 = scmp.eq.s32.totalorder %s20, 0
      %p62 = por %p60, %p61
      %p63 = scmp.ne.s32.totalorder %s51, %s52
      %p64 = scmp.eq.s32.totalorder %s21, 1
      %p65 = por %p63, %p64
      %p67 = scmp.ne.s32.totalorder %s52, %s66
      %p68 = scmp.eq.s32.totalorder %s21, 0
      %p69 = por %p67, %p68
      %s71 = sadd.s32 %s70, 1
      %p74 = scmp.eq.s32.totalorder %s15, 1
      %p75 = scmp.ne.s32.totalorder %s70, %s72
      %p76 = scmp.eq.s32.totalorder %s15, 0
      %p77 = por %p75, %p76
      %p78 = scmp.ne.s32.totalorder %s70, %s72
      %p79 = scmp.eq.s32.totalorder %s20, 1
      %p80 = por %p78, %p79
      %p81 = scmp.ne.s32.totalorder %s72, %s73
      %p82 = scmp.eq.s32.totalorder %s20, 0
      %p83 = por %p81, %p82
      %p84 = scmp.ne.s32.totalorder %s72, %s73
      %p85 = scmp.eq.s32.totalorder %s21, 1
      %p86 = por %p84, %p85
      %p88 = scmp.ne.s32.totalorder %s73, %s87
      %p89 = scmp.eq.s32.totalorder %s21, 0
      %p90 = por %p88, %p89
      %s92 = sadd.s32 %s91, 1
      %p95 = scmp.eq.s32.totalorder %s15, 1
      %p96 = scmp.ne.s32.totalorder %s91, %s93
      %p97 = scmp.eq.s32.totalorder %s15, 0
      %p98 = por %p96, %p97
      %p99 = scmp.ne.s32.totalorder %s91, %s93
      %p100 = scmp.eq.s32.totalorder %s20, 1
      %p101 = por %p99, %p100
      %p102 = scmp.ne.s32.totalorder %s93, %s94
      %p103 = scmp.eq.s32.totalorder %s20, 0
      %p104 = por %p102, %p103
      %p105 = scmp.ne.s32.totalorder %s93, %s94
      %p106 = scmp.eq.s32.totalorder %s21, 1
      %p107 = por %p105, %p106
      %p109 = scmp.ne.s32.totalorder %s94, %s108
      %p110 = scmp.eq.s32.totalorder %s21, 0
      %p111 = por %p109, %p110
      %s113 = sadd.s32 %s112, 1
      %p116 = scmp.eq.s32.totalorder %s15, 1
      %p117 = scmp.ne.s32.totalorder %s112, %s114
      %p118 = scmp.eq.s32.totalorder %s15, 0
      %p119 = por %p117, %p118
      %p120 = scmp.ne.s32.totalorder %s112, %s114
      %p121 = scmp.eq.s32.totalorder %s20, 1
      %p122 = por %p120, %p121
      %p123 = scmp.ne.s32.totalorder %s114, %s115
      %p124 = scmp.eq.s32.totalorder %s20, 0
      %p125 = por %p123, %p124
      %p126 = scmp.ne.s32.totalorder %s114, %s115
      %p127 = scmp.eq.s32.totalorder %s21, 1
      %p128 = por %p126, %p127
      %p130 = scmp.ne.s32.totalorder %s115, %s129
      %p131 = scmp.eq.s32.totalorder %s21, 0
      %p132 = por %p130, %p131
      %s134 = sadd.s32 %s133, 1
      %p137 = scmp.eq.s32.totalorder %s15, 1
      %p138 = scmp.ne.s32.totalorder %s133, %s135
      %p139 = scmp.eq.s32.totalorder %s15, 0
      %p140 = por %p138, %p139
      %p141 = scmp.ne.s32.totalorder %s133, %s135
      %p142 = scmp.eq.s32.totalorder %s20, 1
      %p143 = por %p141, %p142
      %p144 = scmp.ne.s32.totalorder %s135, %s136
      %p145 = scmp.eq.s32.totalorder %s20, 0
      %p146 = por %p144, %p145
      %p147 = scmp.ne.s32.totalorder %s135, %s136
      %p148 = scmp.eq.s32.totalorder %s21, 1
      %p149 = por %p147, %p148
      %p151 = scmp.ne.s32.totalorder %s136, %s150
      %p152 = scmp.eq.s32.totalorder %s21, 0
      %p153 = por %p151, %p152
      %s155 = sadd.s32 %s154, 1
      %p158 = scmp.eq.s32.totalorder %s15, 1
      %p159 = scmp.ne.s32.totalorder %s154, %s156
      %p160 = scmp.eq.s32.totalorder %s15, 0
      %p161 = por %p159, %p160
      %p162 = scmp.ne.s32.totalorder %s154, %s156
      %p163 = scmp.eq.s32.totalorder %s20, 1
      %p164 = por %p162, %p163
      %p165 = scmp.ne.s32.totalorder %s156, %s157
      %p166 = scmp.eq.s32.totalorder %s20, 0
      %p167 = por %p165, %p166
      %p168 = scmp.ne.s32.totalorder %s156, %s157
      %p169 = scmp.eq.s32.totalorder %s21, 1
      %p170 = por %p168, %p169
      %p172 = scmp.ne.s32.totalorder %s157, %s171
      %p173 = scmp.eq.s32.totalorder %s21, 0
      %p174 = por %p172, %p173
      %s176 = sadd.s32 %s175, 1
      %p179 = scmp.eq.s32.totalorder %s15, 1
      %p180 = scmp.ne.s32.totalorder %s175, %s177
      %p181 = scmp.eq.s32.totalorder %s15, 0
      %p182 = por %p180, %p181
      %p183 = scmp.ne.s32.totalorder %s175, %s177
      %p184 = scmp.eq.s32.totalorder %s20, 1
      %p185 = por %p183, %p184
      %p186 = scmp.ne.s32.totalorder %s177, %s178
      %p187 = scmp.eq.s32.totalorder %s20, 0
      %p188 = por %p186, %p187
      %p189 = scmp.ne.s32.totalorder %s177, %s178
      %p190 = scmp.eq.s32.totalorder %s21, 1
      %p191 = por %p189, %p190
      %p193 = scmp.ne.s32.totalorder %s178, %s192
      %p194 = scmp.eq.s32.totalorder %s21, 0
      %p195 = por %p193, %p194
      %s197 = sadd.s32 %s196, 1
      %p200 = scmp.eq.s32.totalorder %s15, 1
      %p201 = scmp.ne.s32.totalorder %s196, %s198
      %p202 = scmp.eq.s32.totalorder %s15, 0
      %p203 = por %p201, %p202
      %p204 = scmp.ne.s32.totalorder %s196, %s198
      %p205 = scmp.eq.s32.totalorder %s20, 1
      %p206 = por %p204, %p205
      %p207 = scmp.ne.s32.totalorder %s198, %s199
      %p208 = scmp.eq.s32.totalorder %s20, 0
      %p209 = por %p207, %p208
      %p210 = scmp.ne.s32.totalorder %s198, %s199
      %p211 = scmp.eq.s32.totalorder %s21, 1
      %p212 = por %p210, %p211
      %p214 = scmp.ne.s32.totalorder %s199, %s213
      %p215 = scmp.eq.s32.totalorder %s21, 0
      %p216 = por %p214, %p215
      %s217 = ssub.s32 %s15, %s22
      %p218 = scmp.eq.s32.totalorder %s217, 0
      %s220 = sadd.s32 %s219, 1
      %s221 = scalar_select %p218, %s219, %s220
      %p224 = pneg %p218
      %p225 = scmp.eq.s32.totalorder %s15, 1
      %p226 = por %p224, %p225
      %p227 = scmp.ne.s32.totalorder %s219, %s222
      %p228 = scmp.eq.s32.totalorder %s15, 0
      %p229 = por %p227, %p228
      %p230 = scmp.ne.s32.totalorder %s219, %s222
      %p231 = scmp.eq.s32.totalorder %s20, 1
      %p232 = por %p230, %p231
      %p233 = scmp.ne.s32.totalorder %s222, %s223
      %p234 = scmp.eq.s32.totalorder %s20, 0
      %p235 = por %p233, %p234
      %p236 = scmp.ne.s32.totalorder %s222, %s223
      %p237 = scmp.eq.s32.totalorder %s21, 1
      %p238 = por %p236, %p237
      %p240 = scmp.ne.s32.totalorder %s223, %s239
      %p241 = scmp.eq.s32.totalorder %s21, 0
      %p242 = por %p240, %p241
      %p243 = scmp.le.s32.totalorder 1, %s15
      %p244 = scmp.lt.s32.totalorder %s15, 3
      %p245 = pnand %p243, %p244
      %p246 = pneg %p245
      // Predicated region
      $region9: #{dan_forward.1} parent=5 // pred_check
        _
      $region10: #{dan_forward.1} parent=5 // pred_check_branch
        %248 = sbr.rel (%p245) target = $region12
      $region11: #{dan_forward.1} parent=5 // pred_region
        %s249 = ssub.s32 %s15, 1
        // Predicated region
        $region13: #{dan_forward.1} parent=11 // pred_check
          %p250 = pneg %p62
        $region14: #{dan_forward.1} parent=11 // pred_check_branch
          %252 = sbr.rel (%p250) target = $region16
        $region15: #{dan_forward.1} parent=11 // pred_region
          _
        $region16: #{dan_forward.1} parent=11 // pred_fallthru
          _
        // Predicated region
        $region17: #{dan_forward.1} parent=11 // pred_check
          %p253 = pneg %p83
        $region18: #{dan_forward.1} parent=11 // pred_check_branch
          %255 = sbr.rel (%p253) target = $region20
        $region19: #{dan_forward.1} parent=11 // pred_region
          _
        $region20: #{dan_forward.1} parent=11 // pred_fallthru
          _
        // Predicated region
        $region21: #{dan_forward.1} parent=11 // pred_check
          %p256 = pneg %p104
        $region22: #{dan_forward.1} parent=11 // pred_check_branch
          %258 = sbr.rel (%p256) target = $region24
        $region23: #{dan_forward.1} parent=11 // pred_region
          _
        $region24: #{dan_forward.1} parent=11 // pred_fallthru
          _
        // Predicated region
        $region25: #{dan_forward.1} parent=11 // pred_check
          %p259 = pneg %p125
        $region26: #{dan_forward.1} parent=11 // pred_check_branch
          %261 = sbr.rel (%p259) target = $region28
        $region27: #{dan_forward.1} parent=11 // pred_region
          _
        $region28: #{dan_forward.1} parent=11 // pred_fallthru
          _
        // Predicated region
        $region29: #{dan_forward.1} parent=11 // pred_check
          %p262 = pneg %p146
        $region30: #{dan_forward.1} parent=11 // pred_check_branch
          %264 = sbr.rel (%p262) target = $region32
        $region31: #{dan_forward.1} parent=11 // pred_region
          _
        $region32: #{dan_forward.1} parent=11 // pred_fallthru
          _
        // Predicated region
        $region33: #{dan_forward.1} parent=11 // pred_check
          %p265 = pneg %p167
        $region34: #{dan_forward.1} parent=11 // pred_check_branch
          %267 = sbr.rel (%p265) target = $region36
        $region35: #{dan_forward.1} parent=11 // pred_region
          _
        $region36: #{dan_forward.1} parent=11 // pred_fallthru
          _
        // Predicated region
        $region37: #{dan_forward.1} parent=11 // pred_check
          %p268 = pneg %p188
        $region38: #{dan_forward.1} parent=11 // pred_check_branch
          %270 = sbr.rel (%p268) target = $region40
        $region39: #{dan_forward.1} parent=11 // pred_region
          _
        $region40: #{dan_forward.1} parent=11 // pred_fallthru
          _
        // Predicated region
        $region41: #{dan_forward.1} parent=11 // pred_check
          %p271 = pneg %p209
        $region42: #{dan_forward.1} parent=11 // pred_check_branch
          %273 = sbr.rel (%p271) target = $region44
        $region43: #{dan_forward.1} parent=11 // pred_region
          _
        $region44: #{dan_forward.1} parent=11 // pred_fallthru
          _
      $region12: #{dan_forward.1} parent=5 // pred_fallthru
        _
      %p274 = scmp.lt.s32.totalorder %s15, 2
      // Predicated region
      $region45: #{dan_forward.1} parent=5 // pred_check
        %p275 = pneg %p274
      $region46: #{dan_forward.1} parent=5 // pred_check_branch
        %277 = sbr.rel (%p275) target = $region48
      $region47: #{dan_forward.1} parent=5 // pred_region
        // Predicated region
        $region49: #{dan_forward.1} parent=47 // pred_check
          %p278 = pneg %p35
        $region50: #{dan_forward.1} parent=47 // pred_check_branch
          %280 = sbr.rel (%p278) target = $region52
        $region51: #{dan_forward.1} parent=47 // pred_region
          %s281 = smul.u32 4, %s15
          %s282 = ssub.s32 5, %s281
          %p283 = scmp.lt.s32.totalorder %s282, 4
          %s284 = scalar_select %p283, %s282, 4
          %s285 = smul.u32 128, %s284
          %s286 = smul.u32 %s285, 3
          %p287 = scmp.lt.s32.totalorder %s281, 4
          %s288 = scalar_select %p287, %s281, 4
          %s289 = smul.addr %s288, 3
          %s290 = smul.addr %s289, 8
          %s291 = scalar_lea.vmem %s0, %s290
          %s292 = smul.u32 4, %s15
          %s293 = ssub.s32 5, %s292
          %p294 = scmp.lt.s32.totalorder %s293, 4
          %s295 = scalar_select %p294, %s293, 4
          %s296 = smul.u32 128, %s295
          %s297 = smul.u32 %s296, 3
        $region52: #{dan_forward.1} parent=47 // pred_fallthru
          _
      $region48: #{dan_forward.1} parent=5 // pred_fallthru
        _
      %p298 = scmp.le.s32.totalorder 1, %s15
      %p299 = scmp.lt.s32.totalorder %s15, 3
      %p300 = pnand %p298, %p299
      %p301 = pneg %p300
      // Predicated region
      $region53: #{dan_forward.1} parent=5 // pred_check
        _
      $region54: #{dan_forward.1} parent=5 // pred_check_branch
        %303 = sbr.rel (%p300) target = $region56
      $region55: #{dan_forward.1} parent=5 // pred_region
        %s304 = ssub.s32 %s15, 1
        %s305 = smul.u32 4, %s20
        %s306 = ssub.s32 5, %s305
        %p307 = scmp.lt.s32.totalorder %s306, 4
        %s308 = scalar_select %p307, %s306, 4
        %s309 = smul.u32 128, %s308
        %s310 = smul.u32 %s309, 3
        %p311 = scmp.lt.s32.totalorder %s305, 4
        %s312 = scalar_select %p311, %s305, 4
        %s313 = smul.addr %s312, 3
        %s314 = smul.addr %s313, 8
        %s315 = scalar_lea.vmem %s0, %s314
        %p316 = pneg %p41
        %p317 = pneg %p38
        %p318 = pneg %p62
        %p319 = pneg %p59
        %p320 = pneg %p83
        %p321 = pneg %p80
        %p322 = pneg %p104
        %p323 = pneg %p101
        %p324 = pneg %p125
        %p325 = pneg %p122
        %p326 = pneg %p146
        %p327 = pneg %p143
        %p328 = pneg %p167
        %p329 = pneg %p164
        %p330 = pneg %p188
        %p331 = pneg %p185
        %p332 = pneg %p209
        %p333 = pneg %p206
        %p334 = pneg %p235
        %p335 = pneg %p232
        %s336 = sand.u32 %s222, 1
        %s337 = sand.u32 %s222, 1
        %s338 = smul.addr %s337, 16
        %s339 = scalar_lea.vmem [#allocation2], %s338
        %s340 = smul.u32 4, %s20
        %s341 = ssub.s32 5, %s340
        %p342 = scmp.lt.s32.totalorder %s341, 4
        %s343 = scalar_select %p342, %s341, 4
        %s344 = smul.u32 128, %s343
        %s345 = smul.u32 %s344, 3
        %p346 = scmp.lt.s32.totalorder %s340, 4
        %s347 = scalar_select %p346, %s340, 4
        %s348 = smul.addr %s347, 3
        %s349 = smul.addr %s348, 8
        %s350 = scalar_lea.vmem %s0, %s349
        %s351 = smul.u32 4, %s20
        %s352 = ssub.s32 5, %s351
        %p353 = scmp.lt.s32.totalorder %s352, 4
        %s354 = scalar_select %p353, %s352, 4
        %s355 = smul.u32 128, %s354
        %s356 = smul.u32 %s355, 3
        %s357 = smul.u32 4, %s20
        %s358 = ssub.s32 5, %s357
        %p359 = scmp.lt.s32.totalorder %s358, 4
        %s360 = scalar_select %p359, %s358, 4
        %s361 = smul.u32 64, %s360
        %v363 = vld [vmem:[%s350] sm:$0xff]
        %v364 = vld [vmem:[%s350 + $0x8] sm:$0xff]
        %v365 = vld [vmem:[%s350 + $0x10] sm:$0xff]
        %v366 = vld [vmem:[%s350 + $0x18] sm:$0xff]
        %v367 = vld [vmem:[%s350 + $0x20] sm:$0xff]
        %v368 = vld [vmem:[%s350 + $0x28] sm:$0xff]
        %v369 = vld [vmem:[%s350 + $0x30] sm:$0xff]
        %v370 = vld [vmem:[%s350 + $0x38] sm:$0xff]
        %v371 = vld [vmem:[%s350 + $0x40] sm:$0xff]
        %v372 = vld [vmem:[%s350 + $0x48] sm:$0xff]
        %v373 = vld [vmem:[%s350 + $0x50] sm:$0xff]
        %v374 = vld [vmem:[%s350 + $0x58] sm:$0xff]
        %v375 = vpack.c.bf16 %v366, %v363
        %v376 = vpack.c.bf16 %v367, %v364
        %v377 = vpack.c.bf16 %v368, %v365
        %v378 = vpack.c.bf16 %v372, %v369
        %v379 = vpack.c.bf16 %v373, %v370
        %v380 = vpack.c.bf16 %v374, %v371
        %v381 = vld [vmem:[%s1] sm:$0xff]
        %v382 = vld [vmem:[%s1 + $0x8] sm:$0xff]
        %v383 = vld [vmem:[%s1 + $0x10] sm:$0xff]
        %v384 = vld [vmem:[%s1 + $0x18] sm:$0xff]
        %v385 = vld [vmem:[%s1 + $0x20] sm:$0xff]
        %v386 = vld [vmem:[%s1 + $0x28] sm:$0xff]
        %v387 = vld [vmem:[%s1 + $0x30] sm:$0xff]
        %v388 = vld [vmem:[%s1 + $0x38] sm:$0xff]
        %v389 = vld [vmem:[%s1 + $0x40] sm:$0xff]
        %v390 = vld [vmem:[%s1 + $0x48] sm:$0xff]
        %v391 = vld [vmem:[%s1 + $0x50] sm:$0xff]
        %v392 = vld [vmem:[%s1 + $0x58] sm:$0xff]
        %v393 = vld [vmem:[%s1 + $0x60] sm:$0xff]
        %v394 = vld [vmem:[%s1 + $0x68] sm:$0xff]
        %v395 = vld [vmem:[%s1 + $0x70] sm:$0xff]
        %v396 = vld [vmem:[%s1 + $0x78] sm:$0xff]
        %v397 = vld [vmem:[%s1 + $0x80] sm:$0xff]
        %v398 = vld [vmem:[%s1 + $0x88] sm:$0xff]
        %v399 = vld [vmem:[%s1 + $0x90] sm:$0xff]
        %v400 = vld [vmem:[%s1 + $0x98] sm:$0xff]
        %v401 = vld [vmem:[%s1 + $0xa0] sm:$0xff]
        %v402 = vld [vmem:[%s1 + $0xa8] sm:$0xff]
        %v403 = vld [vmem:[%s1 + $0xb0] sm:$0xff]
        %v404 = vld [vmem:[%s1 + $0xb8] sm:$0xff]
        %v405 = vld [vmem:[%s1 + $0xc0] sm:$0xff]
        %v406 = vld [vmem:[%s1 + $0xc8] sm:$0xff]
        %v407 = vld [vmem:[%s1 + $0xd0] sm:$0xff]
        %v408 = vld [vmem:[%s1 + $0xd8] sm:$0xff]
        %v409 = vld [vmem:[%s1 + $0xe0] sm:$0xff]
        %v410 = vld [vmem:[%s1 + $0xe8] sm:$0xff]
        %v411 = vld [vmem:[%s1 + $0xf0] sm:$0xff]
        %v412 = vld [vmem:[%s1 + $0xf8] sm:$0xff]
        %v413 = vld [vmem:[%s1 + $0x100] sm:$0xff]
        %v414 = vld [vmem:[%s1 + $0x108] sm:$0xff]
        %v415 = vld [vmem:[%s1 + $0x110] sm:$0xff]
        %v416 = vld [vmem:[%s1 + $0x118] sm:$0xff]
        %v417 = vld [vmem:[%s1 + $0x120] sm:$0xff]
        %v418 = vld [vmem:[%s1 + $0x128] sm:$0xff]
        %v419 = vld [vmem:[%s1 + $0x130] sm:$0x77]
        %v420 = vld [vmem:[%s2] sm:$0x3]
        %v422 = vlaneseq
        %v423 = vshrl.u32 %v422, 7
        %v424 = vsub.s32 0, %v423
        %v425 = vrot.slane %v420, %v424
        %v426 = vlaneseq
        %v427 = vshrl.u32 %v426, 7
        %v428 = vsub.s32 1, %v427
        %v429 = vrot.slane %v420, %v428
        %v471 = vunpack.c.l.b16 %v381
        %v472 = vunpack.c.h.b16 %v381
        %v473 = vunpack.c.l.b16 %v382
        %v474 = vunpack.c.h.b16 %v382
        %v475 = vunpack.c.l.b16 %v383
        %v476 = vunpack.c.h.b16 %v383
        %v477 = vunpack.c.l.b16 %v384
        %v478 = vunpack.c.h.b16 %v384
        %v479 = vunpack.c.l.b16 %v385
        %v480 = vunpack.c.h.b16 %v385
        %v481 = vunpack.c.l.b16 %v386
        %v482 = vunpack.c.h.b16 %v386
        %v483 = vunpack.c.l.b16 %v387
        %v484 = vunpack.c.h.b16 %v387
        %v485 = vunpack.c.l.b16 %v388
        %v486 = vunpack.c.h.b16 %v388
        %v487 = vunpack.c.l.b16 %v389
        %v488 = vunpack.c.h.b16 %v389
        %v489 = vunpack.c.l.b16 %v390
        %v490 = vunpack.c.h.b16 %v390
        %v491 = vunpack.c.l.b16 %v391
        %v492 = vunpack.c.h.b16 %v391
        %v493 = vunpack.c.l.b16 %v392
        %v494 = vunpack.c.h.b16 %v392
        %v495 = vunpack.c.l.b16 %v393
        %v496 = vunpack.c.h.b16 %v393
        %v497 = vunpack.c.l.b16 %v394
        %v498 = vunpack.c.h.b16 %v394
        %v499 = vunpack.c.l.b16 %v395
        %v500 = vunpack.c.h.b16 %v395
        %v501 = vunpack.c.l.b16 %v396
        %v502 = vunpack.c.h.b16 %v396
        %v503 = vunpack.c.l.b16 %v397
        %v504 = vunpack.c.h.b16 %v397
        %v505 = vunpack.c.l.b16 %v398
        %v506 = vunpack.c.h.b16 %v398
        %v507 = vunpack.c.l.b16 %v399
        %v508 = vunpack.c.h.b16 %v399
        %v509 = vunpack.c.l.b16 %v400
        %v510 = vunpack.c.h.b16 %v400
        %v511 = vunpack.c.l.b16 %v401
        %v512 = vunpack.c.h.b16 %v401
        %v513 = vunpack.c.l.b16 %v402
        %v514 = vunpack.c.h.b16 %v402
        %v515 = vunpack.c.l.b16 %v403
        %v516 = vunpack.c.h.b16 %v403
        %v517 = vunpack.c.l.b16 %v404
        %v518 = vunpack.c.h.b16 %v404
        %v519 = vunpack.c.l.b16 %v405
        %v520 = vunpack.c.h.b16 %v405
        %v521 = vunpack.c.l.b16 %v406
        %v522 = vunpack.c.h.b16 %v406
        %v523 = vunpack.c.l.b16 %v407
        %v524 = vunpack.c.h.b16 %v407
        %v525 = vunpack.c.l.b16 %v408
        %v526 = vunpack.c.h.b16 %v408
        %v527 = vunpack.c.l.b16 %v409
        %v528 = vunpack.c.h.b16 %v409
        %v529 = vunpack.c.l.b16 %v410
        %v530 = vunpack.c.h.b16 %v410
        %v531 = vunpack.c.l.b16 %v411
        %v532 = vunpack.c.h.b16 %v411
        %v533 = vunpack.c.l.b16 %v412
        %v534 = vunpack.c.h.b16 %v412
        %v535 = vunpack.c.l.b16 %v413
        %v536 = vunpack.c.h.b16 %v413
        %v537 = vunpack.c.l.b16 %v414
        %v538 = vunpack.c.h.b16 %v414
        %v539 = vunpack.c.l.b16 %v415
        %v540 = vunpack.c.h.b16 %v415
        %v541 = vunpack.c.l.b16 %v416
        %v542 = vunpack.c.h.b16 %v416
        %v543 = vunpack.c.l.b16 %v417
        %v544 = vunpack.c.h.b16 %v417
        %v545 = vunpack.c.l.b16 %v418
        %v546 = vunpack.c.h.b16 %v418
        %v547 = vunpack.c.l.b16 %v419
        %v548 = vunpack.c.h.b16 %v419
        %v549 = vpack.c.b16 %v473, %v471
        %v550 = vpack.c.b16 %v474, %v472
        %v551 = vpack.c.b16 %v477, %v475
        %v552 = vpack.c.b16 %v478, %v476
        %v553 = vpack.c.b16 %v481, %v479
        %v554 = vpack.c.b16 %v482, %v480
        %v555 = vpack.c.b16 %v485, %v483
        %v556 = vpack.c.b16 %v486, %v484
        %v557 = vpack.c.b16 %v489, %v487
        %v558 = vpack.c.b16 %v490, %v488
        %v559 = vpack.c.b16 %v493, %v491
        %v560 = vpack.c.b16 %v494, %v492
        %v561 = vpack.c.b16 %v497, %v495
        %v562 = vpack.c.b16 %v498, %v496
        %v563 = vpack.c.b16 %v501, %v499
        %v564 = vpack.c.b16 %v502, %v500
        %v565 = vpack.c.b16 %v505, %v503
        %v566 = vpack.c.b16 %v506, %v504
        %v567 = vpack.c.b16 %v509, %v507
        %v568 = vpack.c.b16 %v510, %v508
        %v569 = vpack.c.b16 %v513, %v511
        %v570 = vpack.c.b16 %v514, %v512
        %v571 = vpack.c.b16 %v517, %v515
        %v572 = vpack.c.b16 %v518, %v516
        %v573 = vpack.c.b16 %v521, %v519
        %v574 = vpack.c.b16 %v522, %v520
        %v575 = vpack.c.b16 %v525, %v523
        %v576 = vpack.c.b16 %v526, %v524
        %v577 = vpack.c.b16 %v529, %v527
        %v578 = vpack.c.b16 %v530, %v528
        %v579 = vpack.c.b16 %v533, %v531
        %v580 = vpack.c.b16 %v534, %v532
        %v581 = vpack.c.b16 %v537, %v535
        %v582 = vpack.c.b16 %v538, %v536
        %v583 = vpack.c.b16 %v541, %v539
        %v584 = vpack.c.b16 %v542, %v540
        %v585 = vpack.c.b16 %v545, %v543
        %v586 = vpack.c.b16 %v546, %v544
        %v587 = vpack.c.b16 %v547, %v547
        %v588 = vpack.c.b16 %v548, %v548
        %vm627 = vcmask 441344
        %v629 = vsel %vm627, %v377, 0
        %v632 = vsel %vm627, %v380, 0
        %vm634 = vcmask 1042432
        %v636 = vsel %vm634, %v587, 0
        %v639 = vsel %vm634, %v588, 0
        %641 = vmatprep.subr.bf16.mxu0 %v550
        %642 = vmatpush1.bf16.msra.mxu0 %v549
        %643 = vmatprep.subr.bf16.mxu0 %v552
        %644 = vmatpush1.bf16.msra.mxu0 %v551
        %645 = vmatprep.subr.bf16.mxu0 %v554
        %646 = vmatpush1.bf16.msra.mxu0 %v553
        %647 = vmatprep.subr.bf16.mxu0 %v556
        %648 = vmatpush1.bf16.msra.mxu0 %v555
        %649 = vmatprep.subr.bf16.mxu0 %v558
        %650 = vmatpush1.bf16.msra.mxu0 %v557
        %651 = vmatprep.subr.bf16.mxu0 %v560
        %652 = vmatpush1.bf16.msra.mxu0 %v559
        %653 = vmatprep.subr.bf16.mxu0 %v562
        %654 = vmatpush1.bf16.msra.mxu0 %v561
        %655 = vmatprep.subr.bf16.mxu0 %v564
        %656 = vmatpush1.bf16.msra.mxu0 %v563
        %657 = vmatprep.subr.bf16.mxu0 %v566
        %658 = vmatpush1.bf16.msra.mxu0 %v565
        %659 = vmatprep.subr.bf16.mxu0 %v568
        %660 = vmatpush1.bf16.msra.mxu0 %v567
        %661 = vmatprep.subr.bf16.mxu0 %v570
        %662 = vmatpush1.bf16.msra.mxu0 %v569
        %663 = vmatprep.subr.bf16.mxu0 %v572
        %664 = vmatpush1.bf16.msra.mxu0 %v571
        %665 = vmatprep.subr.bf16.mxu0 %v574
        %666 = vmatpush1.bf16.msra.mxu0 %v573
        %667 = vmatprep.subr.bf16.mxu0 %v576
        %668 = vmatpush1.bf16.msra.mxu0 %v575
        %669 = vmatprep.subr.bf16.mxu0 %v578
        %670 = vmatpush1.bf16.msra.mxu0 %v577
        %671 = vmatprep.subr.bf16.mxu0 %v580
        %672 = vmatpush1.bf16.msra.mxu0 %v579
        %673 = vmatprep.mubr.bf16.mxu0 %v376
        %674 = vmatmul.mubr.bf16.gmra.mrb[0].mxu0 %v375
        %v675 = vpop.f32.mrb[0].mxu0
        %v676 = vadd.f32 %v425, %v675
        %v677 = vpop.f32.mrb[0].mxu0
        %v678 = vadd.f32 %v429, %v677
        %v679 = vpop.f32.mrb[0].mxu0
        %v680 = vadd.f32 %v425, %v679
        %v681 = vpop.f32.mrb[0].mxu0
        %v682 = vadd.f32 %v429, %v681
        %683 = vmatprep.mubr.bf16.mxu0 %v379
        %684 = vmatmul.mubr.bf16.gmra.mrb[0].mxu0 %v378
        %v685 = vpop.f32.mrb[0].mxu0
        %v686 = vadd.f32 %v425, %v685
        %v687 = vpop.f32.mrb[0].mxu0
        %v688 = vadd.f32 %v429, %v687
        %v689 = vpop.f32.mrb[0].mxu0
        %v690 = vadd.f32 %v425, %v689
        %v691 = vpop.f32.mrb[0].mxu0
        %v692 = vadd.f32 %v429, %v691
        %693 = vdwg.mxu0
        %694 = vmatprep.subr.bf16.mxu0 %v582
        %695 = vmatpush1.bf16.msra.mxu0 %v581
        %696 = vmatprep.subr.bf16.mxu0 %v584
        %697 = vmatpush1.bf16.msra.mxu0 %v583
        %698 = vmatprep.subr.bf16.mxu0 %v586
        %699 = vmatpush1.bf16.msra.mxu0 %v585
        %700 = vmatprep.subr.bf16.mxu0 %v639
        %701 = vmatpush1.bf16.msra.mxu0 %v636
        %702 = vmatprep.subr.bf16.mxu0 0
        %703 = vmatpush1.bf16.msra.mxu0 0
        %704 = vmatprep.subr.bf16.mxu0 0
        %705 = vmatpush1.bf16.msra.mxu0 0
        %706 = vmatprep.subr.bf16.mxu0 0
        %707 = vmatpush1.bf16.msra.mxu0 0
        %708 = vmatprep.subr.bf16.mxu0 0
        %709 = vmatpush1.bf16.msra.mxu0 0
        %710 = vmatprep.subr.bf16.mxu0 0
        %711 = vmatpush1.bf16.msra.mxu0 0
        %712 = vmatprep.subr.bf16.mxu0 0
        %713 = vmatpush1.bf16.msra.mxu0 0
        %714 = vmatprep.subr.bf16.mxu0 0
        %715 = vmatpush1.bf16.msra.mxu0 0
        %716 = vmatprep.subr.bf16.mxu0 0
        %717 = vmatpush1.bf16.msra.mxu0 0
        %718 = vmatprep.subr.bf16.mxu0 0
        %719 = vmatpush1.bf16.msra.mxu0 0
        %720 = vmatprep.subr.bf16.mxu0 0
        %721 = vmatpush1.bf16.msra.mxu0 0
        %722 = vmatprep.subr.bf16.mxu0 0
        %723 = vmatpush1.bf16.msra.mxu0 0
        %724 = vmatprep.subr.bf16.mxu0 0
        %725 = vmatpush1.bf16.msra.mxu0 0
        %726 = vmatprep.mubr.bf16.mxu0 0
        %727 = vmatmul.mubr.bf16.gmra.mrb[0].mxu0 %v629
        %v728 = vpop.f32.mrb[0].mxu0
        %v729 = vadd.f32 %v676, %v728
        %v730 = vpop.f32.mrb[0].mxu0
        %v731 = vadd.f32 %v678, %v730
        %v732 = vpop.f32.mrb[0].mxu0
        %v733 = vadd.f32 %v680, %v732
        %v734 = vpop.f32.mrb[0].mxu0
        %v735 = vadd.f32 %v682, %v734
        %736 = vmatprep.mubr.bf16.mxu0 0
        %737 = vmatmul.mubr.bf16.gmra.mrb[0].mxu0 %v632
        %v738 = vpop.f32.mrb[0].mxu0
        %v739 = vadd.f32 %v686, %v738
        %v740 = vpop.f32.mrb[0].mxu0
        %v741 = vadd.f32 %v688, %v740
        %v742 = vpop.f32.mrb[0].mxu0
        %v743 = vadd.f32 %v690, %v742
        %v744 = vpop.f32.mrb[0].mxu0
        %v745 = vadd.f32 %v692, %v744
        %746 = vdwg.mxu0
        %vm747 = vcmp.gt.f32.partialorder %v729, 0.0
        %vm748 = vcmp.gt.f32.partialorder %v731, 0.0
        %vm749 = vcmp.gt.f32.partialorder %v733, 0.0
        %vm750 = vcmp.gt.f32.partialorder %v735, 0.0
        %vm751 = vcmp.gt.f32.partialorder %v739, 0.0
        %vm752 = vcmp.gt.f32.partialorder %v741, 0.0
        %vm753 = vcmp.gt.f32.partialorder %v743, 0.0
        %vm754 = vcmp.gt.f32.partialorder %v745, 0.0
        %v755 = vmul.f32 %v729, 0.01
        %v756 = vmul.f32 %v731, 0.01
        %v757 = vmul.f32 %v733, 0.01
        %v758 = vmul.f32 %v735, 0.01
        %v759 = vmul.f32 %v739, 0.01
        %v760 = vmul.f32 %v741, 0.01
        %v761 = vmul.f32 %v743, 0.01
        %v762 = vmul.f32 %v745, 0.01
        %v763 = vsel %vm747, %v729, %v755
        %v764 = vsel %vm748, %v731, %v756
        %v765 = vsel %vm749, %v733, %v757
        %v766 = vsel %vm750, %v735, %v758
        %v767 = vsel %vm751, %v739, %v759
        %v768 = vsel %vm752, %v741, %v760
        %v769 = vsel %vm753, %v743, %v761
        %v770 = vsel %vm754, %v745, %v762
        %v771 = vpack.c.bf16 %v765, %v763
        %v772 = vpack.c.bf16 %v766, %v764
        %v773 = vpack.c.bf16 %v769, %v767
        %v774 = vpack.c.bf16 %v770, %v768
        %v775 = vld [vmem:[%s3] sm:$0xf]
        %v776 = vld [vmem:[%s3 + $0x4] sm:$0xf]
        %v777 = vld [vmem:[%s3 + $0x8] sm:$0xf]
        %v778 = vld [vmem:[%s3 + $0xc] sm:$0xf]
        %v779 = vld [vmem:[%s3 + $0x10] sm:$0xf]
        %v780 = vld [vmem:[%s3 + $0x14] sm:$0xf]
        %v781 = vld [vmem:[%s3 + $0x18] sm:$0xf]
        %v782 = vld [vmem:[%s3 + $0x1c] sm:$0xf]
        %v783 = vld [vmem:[%s3 + $0x20] sm:$0xf]
        %v784 = vld [vmem:[%s3 + $0x24] sm:$0xf]
        %v785 = vld [vmem:[%s3 + $0x28] sm:$0xf]
        %v786 = vld [vmem:[%s3 + $0x2c] sm:$0xf]
        %v787 = vld [vmem:[%s3 + $0x30] sm:$0xf]
        %v788 = vld [vmem:[%s3 + $0x34] sm:$0xf]
        %v789 = vld [vmem:[%s3 + $0x38] sm:$0xf]
        %v790 = vld [vmem:[%s3 + $0x3c] sm:$0xf]
        %v791 = vld [vmem:[%s3 + $0x40] sm:$0xf]
        %v792 = vld [vmem:[%s3 + $0x44] sm:$0xf]
        %v793 = vld [vmem:[%s3 + $0x48] sm:$0xf]
        %v794 = vld [vmem:[%s3 + $0x4c] sm:$0xf]
        %v795 = vld [vmem:[%s3 + $0x50] sm:$0xf]
        %v796 = vld [vmem:[%s3 + $0x54] sm:$0xf]
        %v797 = vld [vmem:[%s3 + $0x58] sm:$0xf]
        %v798 = vld [vmem:[%s3 + $0x5c] sm:$0xf]
        %v799 = vld [vmem:[%s3 + $0x60] sm:$0xf]
        %v800 = vld [vmem:[%s3 + $0x64] sm:$0xf]
        %v801 = vld [vmem:[%s3 + $0x68] sm:$0xf]
        %v802 = vld [vmem:[%s3 + $0x6c] sm:$0xf]
        %v803 = vld [vmem:[%s3 + $0x70] sm:$0xf]
        %v804 = vld [vmem:[%s3 + $0x74] sm:$0xf]
        %v805 = vld [vmem:[%s3 + $0x78] sm:$0xf]
        %v806 = vld [vmem:[%s3 + $0x7c] sm:$0xf]
        %v807 = vld [vmem:[%s4] sm:$0x1]
        %v809 = vlaneseq
        %v810 = vshrl.u32 %v809, 7
        %v811 = vsub.s32 0, %v810
        %v812 = vrot.slane %v807, %v811
        %v846 = vunpack.c.l.b16 %v775
        %v847 = vunpack.c.l.b16 %v776
        %v848 = vunpack.c.l.b16 %v777
        %v849 = vunpack.c.l.b16 %v778
        %v850 = vunpack.c.l.b16 %v779
        %v851 = vunpack.c.l.b16 %v780
        %v852 = vunpack.c.l.b16 %v781
        %v853 = vunpack.c.l.b16 %v782
        %v854 = vunpack.c.l.b16 %v783
        %v855 = vunpack.c.l.b16 %v784
        %v856 = vunpack.c.l.b16 %v785
        %v857 = vunpack.c.l.b16 %v786
        %v858 = vunpack.c.l.b16 %v787
        %v859 = vunpack.c.l.b16 %v788
        %v860 = vunpack.c.l.b16 %v789
        %v861 = vunpack.c.l.b16 %v790
        %v862 = vunpack.c.l.b16 %v791
        %v863 = vunpack.c.l.b16 %v792
        %v864 = vunpack.c.l.b16 %v793
        %v865 = vunpack.c.l.b16 %v794
        %v866 = vunpack.c.l.b16 %v795
        %v867 = vunpack.c.l.b16 %v796
        %v868 = vunpack.c.l.b16 %v797
        %v869 = vunpack.c.l.b16 %v798
        %v870 = vunpack.c.l.b16 %v799
        %v871 = vunpack.c.l.b16 %v800
        %v872 = vunpack.c.l.b16 %v801
        %v873 = vunpack.c.l.b16 %v802
        %v874 = vunpack.c.l.b16 %v803
        %v875 = vunpack.c.l.b16 %v804
        %v876 = vunpack.c.l.b16 %v805
        %v877 = vunpack.c.l.b16 %v806
        %v878 = vpack.c.b16 %v847, %v846
        %v879 = vpack.c.b16 %v849, %v848
        %v880 = vpack.c.b16 %v851, %v850
        %v881 = vpack.c.b16 %v853, %v852
        %v882 = vpack.c.b16 %v855, %v854
        %v883 = vpack.c.b16 %v857, %v856
        %v884 = vpack.c.b16 %v859, %v858
        %v885 = vpack.c.b16 %v861, %v860
        %v886 = vpack.c.b16 %v863, %v862
        %v887 = vpack.c.b16 %v865, %v864
        %v888 = vpack.c.b16 %v867, %v866
        %v889 = vpack.c.b16 %v869, %v868
        %v890 = vpack.c.b16 %v871, %v870
        %v891 = vpack.c.b16 %v873, %v872
        %v892 = vpack.c.b16 %v875, %v874
        %v893 = vpack.c.b16 %v877, %v876
        %910 = vmatprep.subr.bf16.mxu0 0
        %911 = vmatpush1.bf16.msra.mxu0 %v878
        %912 = vmatprep.subr.bf16.mxu0 0
        %913 = vmatpush1.bf16.msra.mxu0 %v879
        %914 = vmatprep.subr.bf16.mxu0 0
        %915 = vmatpush1.bf16.msra.mxu0 %v880
        %916 = vmatprep.subr.bf16.mxu0 0
        %917 = vmatpush1.bf16.msra.mxu0 %v881
        %918 = vmatprep.subr.bf16.mxu0 0
        %919 = vmatpush1.bf16.msra.mxu0 %v882
        %920 = vmatprep.subr.bf16.mxu0 0
        %921 = vmatpush1.bf16.msra.mxu0 %v883
        %922 = vmatprep.subr.bf16.mxu0 0
        %923 = vmatpush1.bf16.msra.mxu0 %v884
        %924 = vmatprep.subr.bf16.mxu0 0
        %925 = vmatpush1.bf16.msra.mxu0 %v885
        %926 = vmatprep.subr.bf16.mxu0 0
        %927 = vmatpush1.bf16.msra.mxu0 %v886
        %928 = vmatprep.subr.bf16.mxu0 0
        %929 = vmatpush1.bf16.msra.mxu0 %v887
        %930 = vmatprep.subr.bf16.mxu0 0
        %931 = vmatpush1.bf16.msra.mxu0 %v888
        %932 = vmatprep.subr.bf16.mxu0 0
        %933 = vmatpush1.bf16.msra.mxu0 %v889
        %934 = vmatprep.subr.bf16.mxu0 0
        %935 = vmatpush1.bf16.msra.mxu0 %v890
        %936 = vmatprep.subr.bf16.mxu0 0
        %937 = vmatpush1.bf16.msra.mxu0 %v891
        %938 = vmatprep.subr.bf16.mxu0 0
        %939 = vmatpush1.bf16.msra.mxu0 %v892
        %940 = vmatprep.subr.bf16.mxu0 0
        %941 = vmatpush1.bf16.msra.mxu0 %v893
        %942 = vmatprep.mubr.bf16.mxu0 %v772
        %943 = vmatmul.mubr.bf16.gmra.mrb[0].mxu0 %v771
        %v944 = vpop.f32.mrb[0].mxu0
        %v945 = vadd.f32 %v812, %v944
        %v946 = vpop.f32.mrb[0].mxu0
        %v947 = vpop.f32.mrb[0].mxu0
        %v948 = vadd.f32 %v812, %v947
        %v949 = vpop.f32.mrb[0].mxu0
        %950 = vmatprep.mubr.bf16.mxu0 %v774
        %951 = vmatmul.mubr.bf16.gmra.mrb[0].mxu0 %v773
        %v952 = vpop.f32.mrb[0].mxu0
        %v953 = vadd.f32 %v812, %v952
        %v954 = vpop.f32.mrb[0].mxu0
        %v955 = vpop.f32.mrb[0].mxu0
        %v956 = vadd.f32 %v812, %v955
        %v957 = vpop.f32.mrb[0].mxu0
        %958 = vdwg.mxu0
        %vm959 = vcmp.gt.f32.partialorder %v945, 0.0
        %vm960 = vcmp.gt.f32.partialorder %v948, 0.0
        %vm961 = vcmp.gt.f32.partialorder %v953, 0.0
        %vm962 = vcmp.gt.f32.partialorder %v956, 0.0
        %v963 = vmul.f32 %v945, 0.01
        %v964 = vmul.f32 %v948, 0.01
        %v965 = vmul.f32 %v953, 0.01
        %v966 = vmul.f32 %v956, 0.01
        %v967 = vsel %vm959, %v945, %v963
        %v968 = vsel %vm960, %v948, %v964
        %v969 = vsel %vm961, %v953, %v965
        %v970 = vsel %vm962, %v956, %v966
        %v971 = vpack.c.bf16 %v968, %v967
        %v972 = vpack.c.bf16 %v970, %v969
        %v973 = vld [vmem:[%s5] sm:$0xf]
        %v974 = vld [vmem:[%s5 + $0x4] sm:$0xf]
        %v975 = vld [vmem:[%s5 + $0x8] sm:$0xf]
        %v976 = vld [vmem:[%s5 + $0xc] sm:$0xf]
        %v977 = vld [vmem:[%s5 + $0x10] sm:$0xf]
        %v978 = vld [vmem:[%s5 + $0x14] sm:$0xf]
        %v979 = vld [vmem:[%s5 + $0x18] sm:$0xf]
        %v980 = vld [vmem:[%s5 + $0x1c] sm:$0xf]
        %v981 = vld [vmem:[%s5 + $0x20] sm:$0xf]
        %v982 = vld [vmem:[%s5 + $0x24] sm:$0xf]
        %v983 = vld [vmem:[%s5 + $0x28] sm:$0xf]
        %v984 = vld [vmem:[%s5 + $0x2c] sm:$0xf]
        %v985 = vld [vmem:[%s5 + $0x30] sm:$0xf]
        %v986 = vld [vmem:[%s5 + $0x34] sm:$0xf]
        %v987 = vld [vmem:[%s5 + $0x38] sm:$0xf]
        %v988 = vld [vmem:[%s5 + $0x3c] sm:$0xf]
        %v989 = vld [vmem:[%s6] sm:$0x1]
        %v991 = vlaneseq
        %v992 = vshrl.u32 %v991, 7
        %v993 = vsub.s32 0, %v992
        %v994 = vrot.slane %v989, %v993
        %v1012 = vunpack.c.l.b16 %v973
        %v1013 = vunpack.c.l.b16 %v974
        %v1014 = vunpack.c.l.b16 %v975
        %v1015 = vunpack.c.l.b16 %v976
        %v1016 = vunpack.c.l.b16 %v977
        %v1017 = vunpack.c.l.b16 %v978
        %v1018 = vunpack.c.l.b16 %v979
        %v1019 = vunpack.c.l.b16 %v980
        %v1020 = vunpack.c.l.b16 %v981
        %v1021 = vunpack.c.l.b16 %v982
        %v1022 = vunpack.c.l.b16 %v983
        %v1023 = vunpack.c.l.b16 %v984
        %v1024 = vunpack.c.l.b16 %v985
        %v1025 = vunpack.c.l.b16 %v986
        %v1026 = vunpack.c.l.b16 %v987
        %v1027 = vunpack.c.l.b16 %v988
        %v1028 = vpack.c.b16 %v1013, %v1012
        %v1029 = vpack.c.b16 %v1015, %v1014
        %v1030 = vpack.c.b16 %v1017, %v1016
        %v1031 = vpack.c.b16 %v1019, %v1018
        %v1032 = vpack.c.b16 %v1021, %v1020
        %v1033 = vpack.c.b16 %v1023, %v1022
        %v1034 = vpack.c.b16 %v1025, %v1024
        %v1035 = vpack.c.b16 %v1027, %v1026
        %1044 = vmatprep.subr.bf16.mxu0 0
        %1045 = vmatpush1.bf16.msra.mxu0 %v1028
        %1046 = vmatprep.subr.bf16.mxu0 0
        %1047 = vmatpush1.bf16.msra.mxu0 %v1029
        %1048 = vmatprep.subr.bf16.mxu0 0
        %1049 = vmatpush1.bf16.msra.mxu0 %v1030
        %1050 = vmatprep.subr.bf16.mxu0 0
        %1051 = vmatpush1.bf16.msra.mxu0 %v1031
        %1052 = vmatprep.subr.bf16.mxu0 0
        %1053 = vmatpush1.bf16.msra.mxu0 %v1032
        %1054 = vmatprep.subr.bf16.mxu0 0
        %1055 = vmatpush1.bf16.msra.mxu0 %v1033
        %1056 = vmatprep.subr.bf16.mxu0 0
        %1057 = vmatpush1.bf16.msra.mxu0 %v1034
        %1058 = vmatprep.subr.bf16.mxu0 0
        %1059 = vmatpush1.bf16.msra.mxu0 %v1035
        %1060 = vmatprep.subr.bf16.mxu0 0
        %1061 = vmatpush1.bf16.msra.mxu0 0
        %1062 = vmatprep.subr.bf16.mxu0 0
        %1063 = vmatpush1.bf16.msra.mxu0 0
        %1064 = vmatprep.subr.bf16.mxu0 0
        %1065 = vmatpush1.bf16.msra.mxu0 0
        %1066 = vmatprep.subr.bf16.mxu0 0
        %1067 = vmatpush1.bf16.msra.mxu0 0
        %1068 = vmatprep.subr.bf16.mxu0 0
        %1069 = vmatpush1.bf16.msra.mxu0 0
        %1070 = vmatprep.subr.bf16.mxu0 0
        %1071 = vmatpush1.bf16.msra.mxu0 0
        %1072 = vmatprep.subr.bf16.mxu0 0
        %1073 = vmatpush1.bf16.msra.mxu0 0
        %1074 = vmatprep.subr.bf16.mxu0 0
        %1075 = vmatpush1.bf16.msra.mxu0 0
        %1076 = vmatprep.mubr.bf16.mxu0 0
        %1077 = vmatmul.mubr.bf16.gmra.mrb[0].mxu0 %v971
        %v1078 = vpop.f32.mrb[0].mxu0
        %v1079 = vadd.f32 %v994, %v1078
        %v1080 = vpop.f32.mrb[0].mxu0
        %v1081 = vpop.f32.mrb[0].mxu0
        %v1082 = vadd.f32 %v994, %v1081
        %v1083 = vpop.f32.mrb[0].mxu0
        %1084 = vmatprep.mubr.bf16.mxu0 0
        %1085 = vmatmul.mubr.bf16.gmra.mrb[0].mxu0 %v972
        %v1086 = vpop.f32.mrb[0].mxu0
        %v1087 = vadd.f32 %v994, %v1086
        %v1088 = vpop.f32.mrb[0].mxu0
        %v1089 = vpop.f32.mrb[0].mxu0
        %v1090 = vadd.f32 %v994, %v1089
        %v1091 = vpop.f32.mrb[0].mxu0
        %1092 = vdwg.mxu0
        %vm1093 = vcmp.gt.f32.partialorder %v1079, 0.0
        %vm1094 = vcmp.gt.f32.partialorder %v1082, 0.0
        %vm1095 = vcmp.gt.f32.partialorder %v1087, 0.0
        %vm1096 = vcmp.gt.f32.partialorder %v1090, 0.0
        %v1097 = vmul.f32 %v1079, 0.01
        %v1098 = vmul.f32 %v1082, 0.01
        %v1099 = vmul.f32 %v1087, 0.01
        %v1100 = vmul.f32 %v1090, 0.01
        %v1101 = vsel %vm1093, %v1079, %v1097
        %v1102 = vsel %vm1094, %v1082, %v1098
        %v1103 = vsel %vm1095, %v1087, %v1099
        %v1104 = vsel %vm1096, %v1090, %v1100
        %v1105 = vpack.c.bf16 %v1102, %v1101
        %v1106 = vpack.c.bf16 %v1104, %v1103
        %v1107 = vld [vmem:[%s7] sm:$0xf]
        %v1108 = vld [vmem:[%s7 + $0x4] sm:$0xf]
        %v1109 = vld [vmem:[%s7 + $0x8] sm:$0xf]
        %v1110 = vld [vmem:[%s7 + $0xc] sm:$0xf]
        %v1111 = vld [vmem:[%s7 + $0x10] sm:$0xf]
        %v1112 = vld [vmem:[%s7 + $0x14] sm:$0xf]
        %v1113 = vld [vmem:[%s7 + $0x18] sm:$0xf]
        %v1114 = vld [vmem:[%s7 + $0x1c] sm:$0xf]
        %v1115 = vld [vmem:[%s7 + $0x20] sm:$0xf]
        %v1116 = vld [vmem:[%s7 + $0x24] sm:$0xf]
        %v1117 = vld [vmem:[%s7 + $0x28] sm:$0xf]
        %v1118 = vld [vmem:[%s7 + $0x2c] sm:$0xf]
        %v1119 = vld [vmem:[%s7 + $0x30] sm:$0xf]
        %v1120 = vld [vmem:[%s7 + $0x34] sm:$0xf]
        %v1121 = vld [vmem:[%s7 + $0x38] sm:$0xf]
        %v1122 = vld [vmem:[%s7 + $0x3c] sm:$0xf]
        %v1123 = vld [vmem:[%s8] sm:$0x1]
        %v1125 = vlaneseq
        %v1126 = vshrl.u32 %v1125, 7
        %v1127 = vsub.s32 0, %v1126
        %v1128 = vrot.slane %v1123, %v1127
        %v1146 = vunpack.c.l.b16 %v1107
        %v1147 = vunpack.c.l.b16 %v1108
        %v1148 = vunpack.c.l.b16 %v1109
        %v1149 = vunpack.c.l.b16 %v1110
        %v1150 = vunpack.c.l.b16 %v1111
        %v1151 = vunpack.c.l.b16 %v1112
        %v1152 = vunpack.c.l.b16 %v1113
        %v1153 = vunpack.c.l.b16 %v1114
        %v1154 = vunpack.c.l.b16 %v1115
        %v1155 = vunpack.c.l.b16 %v1116
        %v1156 = vunpack.c.l.b16 %v1117
        %v1157 = vunpack.c.l.b16 %v1118
        %v1158 = vunpack.c.l.b16 %v1119
        %v1159 = vunpack.c.l.b16 %v1120
        %v1160 = vunpack.c.l.b16 %v1121
        %v1161 = vunpack.c.l.b16 %v1122
        %v1162 = vpack.c.b16 %v1147, %v1146
        %v1163 = vpack.c.b16 %v1149, %v1148
        %v1164 = vpack.c.b16 %v1151, %v1150
        %v1165 = vpack.c.b16 %v1153, %v1152
        %v1166 = vpack.c.b16 %v1155, %v1154
        %v1167 = vpack.c.b16 %v1157, %v1156
        %v1168 = vpack.c.b16 %v1159, %v1158
        %v1169 = vpack.c.b16 %v1161, %v1160
        %1178 = vmatprep.subr.bf16.mxu0 0
        %1179 = vmatpush1.bf16.msra.mxu0 %v1162
        %1180 = vmatprep.subr.bf16.mxu0 0
        %1181 = vmatpush1.bf16.msra.mxu0 %v1163
        %1182 = vmatprep.subr.bf16.mxu0 0
        %1183 = vmatpush1.bf16.msra.mxu0 %v1164
        %1184 = vmatprep.subr.bf16.mxu0 0
        %1185 = vmatpush1.bf16.msra.mxu0 %v1165
        %1186 = vmatprep.subr.bf16.mxu0 0
        %1187 = vmatpush1.bf16.msra.mxu0 %v1166
        %1188 = vmatprep.subr.bf16.mxu0 0
        %1189 = vmatpush1.bf16.msra.mxu0 %v1167
        %1190 = vmatprep.subr.bf16.mxu0 0
        %1191 = vmatpush1.bf16.msra.mxu0 %v1168
        %1192 = vmatprep.subr.bf16.mxu0 0
        %1193 = vmatpush1.bf16.msra.mxu0 %v1169
        %1194 = vmatprep.subr.bf16.mxu0 0
        %1195 = vmatpush1.bf16.msra.mxu0 0
        %1196 = vmatprep.subr.bf16.mxu0 0
        %1197 = vmatpush1.bf16.msra.mxu0 0
        %1198 = vmatprep.subr.bf16.mxu0 0
        %1199 = vmatpush1.bf16.msra.mxu0 0
        %1200 = vmatprep.subr.bf16.mxu0 0
        %1201 = vmatpush1.bf16.msra.mxu0 0
        %1202 = vmatprep.subr.bf16.mxu0 0
        %1203 = vmatpush1.bf16.msra.mxu0 0
        %1204 = vmatprep.subr.bf16.mxu0 0
        %1205 = vmatpush1.bf16.msra.mxu0 0
        %1206 = vmatprep.subr.bf16.mxu0 0
        %1207 = vmatpush1.bf16.msra.mxu0 0
        %1208 = vmatprep.subr.bf16.mxu0 0
        %1209 = vmatpush1.bf16.msra.mxu0 0
        %1210 = vmatprep.mubr.bf16.mxu0 0
        %1211 = vmatmul.mubr.bf16.gmra.mrb[0].mxu0 %v1105
        %v1212 = vpop.f32.mrb[0].mxu0
        %v1213 = vadd.f32 %v1128, %v1212
        %v1214 = vpop.f32.mrb[0].mxu0
        %v1215 = vpop.f32.mrb[0].mxu0
        %v1216 = vadd.f32 %v1128, %v1215
        %v1217 = vpop.f32.mrb[0].mxu0
        %1218 = vmatprep.mubr.bf16.mxu0 0
        %1219 = vmatmul.mubr.bf16.gmra.mrb[0].mxu0 %v1106
        %v1220 = vpop.f32.mrb[0].mxu0
        %v1221 = vadd.f32 %v1128, %v1220
        %v1222 = vpop.f32.mrb[0].mxu0
        %v1223 = vpop.f32.mrb[0].mxu0
        %v1224 = vadd.f32 %v1128, %v1223
        %v1225 = vpop.f32.mrb[0].mxu0
        %1226 = vdwg.mxu0
        %v1227 = vpack.c.bf16 %v1216, %v1213
        %v1228 = vpack.c.bf16 %v1224, %v1221
        %v1231 = vunpack.c.l.b16 %v1227
        %v1232 = vunpack.c.h.b16 %v1227
        %v1233 = vunpack.c.l.b16 %v1228
        %v1234 = vunpack.c.h.b16 %v1228
        %v1235 = vpack.c.b16 %v1231, %v1231
        %v1236 = vpack.c.b16 %v1232, %v1232
        %v1237 = vpack.c.b16 %v1233, %v1233
        %v1238 = vpack.c.b16 %v1234, %v1234
        %1243 = vst [vmem:[%s339] sm:$0xf] %v1235
        %1244 = vst [vmem:[%s339 + $0x4] sm:$0xf] %v1236
        %1245 = vst [vmem:[%s339 + $0x8] sm:$0xf] %v1237
        %1246 = vst [vmem:[%s339 + $0xc] sm:$0xf] %v1238
        %s1247 = sand.u32 %s222, 1
        %s1248 = sand.u32 %s222, 1
        %s1249 = smul.addr %s1248, 16
        %s1250 = scalar_lea.vmem [#allocation2], %s1249
        // Predicated region
        $region57: #{dan_forward.1} parent=55 // pred_check
          %p1251 = pneg %p232
        $region58: #{dan_forward.1} parent=55 // pred_check_branch
          %1253 = sbr.rel (%p1251) target = $region60
        $region59: #{dan_forward.1} parent=55 // pred_region
          %s1254 = smul.u32 4, %s20
          %s1255 = ssub.s32 5, %s1254
          %p1256 = scmp.lt.s32.totalorder %s1255, 4
          %s1257 = scalar_select %p1256, %s1255, 4
          %s1258 = smul.u32 64, %s1257
          %p1259 = scmp.ne.s32.totalorder 0, %s1258
          %s1260 = smul.addr %s1254, 4
          %s1261 = scalar_lea.vmem %s9, %s1260
          // Predicated region
          $region61: #{dan_forward.1} parent=59 // pred_check
            %p1262 = pneg %p1259
          $region62: #{dan_forward.1} parent=59 // pred_check_branch
            %1264 = sbr.rel (%p1262) target = $region64
          $region63: #{dan_forward.1} parent=59 // pred_region
            // Predicated region
            $region65: #{dan_forward.1} parent=63 // pred_check
              _
            $region66: #{dan_forward.1} parent=63 // pred_check_branch
              %1266 = sbr.rel target = $region68
            $region67: #{dan_forward.1} parent=63 // pred_region
              // Predicated region
              $region87: #{dan_forward.1} parent=67 // pred_check
                _
              $region88: #{dan_forward.1} parent=67 // pred_check_branch
                %1321 = sbr.rel (0) target = $region90
              $region89: #{dan_forward.1} parent=67 // pred_region
                %s1323 = sshrl.u32 %s1257, 2
                // While loop
                $region91: #{dan_forward.1} parent=89 // loop_pre_header
                  _
                $region92: #{dan_forward.1} parent=89 // loop_header
                  %s1325 = sphi 0, %s1327
                  %p1326 = scmp.ge.s32.totalorder %s1325, %s1323
                  %s1330 = sphi 0, %s1343
                  %s1331 = sphi %s1250, %s1346
                  %s1332 = sphi %s1261, %s1347
                $region93: #{dan_forward.1} parent=89 // loop_header_branch
                  %1329 = sbr.rel (%p1326) target = $region97
                $region94: #{dan_forward.1} parent=89 // loop_body
                  %v1333 = vld [vmem:[%s1331] sm:$0xf]
                  %1334 = vst [vmem:[%s1332] sm:$0xf] %v1333
                  %v1335 = vld [vmem:[%s1331 + $0x4] sm:$0xf]
                  %1336 = vst [vmem:[%s1332 + $0x4] sm:$0xf] %v1335
                  %v1337 = vld [vmem:[%s1331 + $0x8] sm:$0xf]
                  %1338 = vst [vmem:[%s1332 + $0x8] sm:$0xf] %v1337
                  %v1339 = vld [vmem:[%s1331 + $0xc] sm:$0xf]
                  %1340 = vst [vmem:[%s1332 + $0xc] sm:$0xf] %v1339
                  %s1341 = sadd.s32 1, %s1330
                  %p1342 = scmp.ge.s32.totalorder %s1341, %s1323
                  %s1343 = scalar_select %p1342, 0, %s1341
                  %s1344 = smul.u32 %s1343, 16
                  %s1345 = smul.u32 %s1343, 16
                  %s1346 = scalar_lea.vmem %s1250, %s1344 [#allocation2]
                  %s1347 = scalar_lea.vmem %s1261, %s1345
                $region95: #{dan_forward.1} parent=89 // loop_footer
                  %s1327 = sadd.s32 %s1325, 1
                $region96: #{dan_forward.1} parent=89 // loop_footer_branch
                  %1324 = sbr.rel target = $region92
                $region97: #{dan_forward.1} parent=89 // loop_exit
                  _
                %s1348 = sshrl.u32 %s1257, 2
                %s1349 = sand.u32 %s1257, 3
                %s1350 = smul.u32 %s1348, 4
                %s1351 = smul.u32 4, %s1350
                %s1352 = scalar_lea.vmem %s1250, %s1351 [#allocation2]
                %s1353 = smul.u32 4, %s1350
                %s1354 = scalar_lea.vmem %s1261, %s1353
                // While loop
                $region98: #{dan_forward.1} parent=89 // loop_pre_header
                  _
                $region99: #{dan_forward.1} parent=89 // loop_header
                  %s1356 = sphi 0, %s1358
                  %p1357 = scmp.ge.s32.totalorder %s1356, %s1349
                  %s1361 = sphi 0, %s1368
                  %s1362 = sphi %s1352, %s1371
                  %s1363 = sphi %s1354, %s1372
                $region100: #{dan_forward.1} parent=89 // loop_header_branch
                  %1360 = sbr.rel (%p1357) target = $region104
                $region101: #{dan_forward.1} parent=89 // loop_body
                  %v1364 = vld [vmem:[%s1362] sm:$0xf]
                  %1365 = vst [vmem:[%s1363] sm:$0xf] %v1364
                  %s1366 = sadd.s32 1, %s1361
                  %p1367 = scmp.ge.s32.totalorder %s1366, %s1349
                  %s1368 = scalar_select %p1367, 0, %s1366
                  %s1369 = smul.u32 %s1368, 4
                  %s1370 = smul.u32 %s1368, 4
                  %s1371 = scalar_lea.vmem %s1352, %s1369 [#allocation2]
                  %s1372 = scalar_lea.vmem %s1354, %s1370
                $region102: #{dan_forward.1} parent=89 // loop_footer
                  %s1358 = sadd.s32 %s1356, 1
                $region103: #{dan_forward.1} parent=89 // loop_footer_branch
                  %1355 = sbr.rel target = $region99
                $region104: #{dan_forward.1} parent=89 // loop_exit
                  _
              $region90: #{dan_forward.1} parent=67 // pred_fallthru
                _
            $region68: #{dan_forward.1} parent=63 // pred_fallthru
              _
            // Predicated region
            $region69: #{dan_forward.1} parent=63 // pred_check
              _
            $region70: #{dan_forward.1} parent=63 // pred_check_branch
              %1268 = sbr.rel (0) target = $region72
            $region71: #{dan_forward.1} parent=63 // pred_region
              %s1270 = sshrl.u32 %s1257, 2
              // While loop
              $region73: #{dan_forward.1} parent=71 // loop_pre_header
                _
              $region74: #{dan_forward.1} parent=71 // loop_header
                %s1272 = sphi 0, %s1274
                %p1273 = scmp.ge.s32.totalorder %s1272, %s1270
                %s1277 = sphi 0, %s1290
                %s1278 = sphi %s1250, %s1293
                %s1279 = sphi %s1261, %s1294
              $region75: #{dan_forward.1} parent=71 // loop_header_branch
                %1276 = sbr.rel (%p1273) target = $region79
              $region76: #{dan_forward.1} parent=71 // loop_body
                %v1280 = vld [vmem:[%s1278] sm:$0xf]
                %1281 = vst [vmem:[%s1279] sm:$0xf] %v1280
                %v1282 = vld [vmem:[%s1278 + $0x4] sm:$0xf]
                %1283 = vst [vmem:[%s1279 + $0x4] sm:$0xf] %v1282
                %v1284 = vld [vmem:[%s1278 + $0x8] sm:$0xf]
                %1285 = vst [vmem:[%s1279 + $0x8] sm:$0xf] %v1284
                %v1286 = vld [vmem:[%s1278 + $0xc] sm:$0xf]
                %1287 = vst [vmem:[%s1279 + $0xc] sm:$0xf] %v1286
                %s1288 = sadd.s32 1, %s1277
                %p1289 = scmp.ge.s32.totalorder %s1288, %s1270
                %s1290 = scalar_select %p1289, 0, %s1288
                %s1291 = smul.u32 %s1290, 16
                %s1292 = smul.u32 %s1290, 16
                %s1293 = scalar_lea.vmem %s1250, %s1291 [#allocation2]
                %s1294 = scalar_lea.vmem %s1261, %s1292
              $region77: #{dan_forward.1} parent=71 // loop_footer
                %s1274 = sadd.s32 %s1272, 1
              $region78: #{dan_forward.1} parent=71 // loop_footer_branch
                %1271 = sbr.rel target = $region74
              $region79: #{dan_forward.1} parent=71 // loop_exit
                _
              %s1295 = sshrl.u32 %s1257, 2
              %s1296 = sand.u32 %s1257, 3
              %s1297 = smul.u32 %s1295, 4
              %s1298 = smul.u32 4, %s1297
              %s1299 = scalar_lea.vmem %s1250, %s1298 [#allocation2]
              %s1300 = smul.u32 4, %s1297
              %s1301 = scalar_lea.vmem %s1261, %s1300
              // While loop
              $region80: #{dan_forward.1} parent=71 // loop_pre_header
                _
              $region81: #{dan_forward.1} parent=71 // loop_header
                %s1303 = sphi 0, %s1305
                %p1304 = scmp.ge.s32.totalorder %s1303, %s1296
                %s1308 = sphi 0, %s1315
                %s1309 = sphi %s1299, %s1318
                %s1310 = sphi %s1301, %s1319
              $region82: #{dan_forward.1} parent=71 // loop_header_branch
                %1307 = sbr.rel (%p1304) target = $region86
              $region83: #{dan_forward.1} parent=71 // loop_body
                %v1311 = vld [vmem:[%s1309] sm:$0xf]
                %1312 = vst [vmem:[%s1310] sm:$0xf] %v1311
                %s1313 = sadd.s32 1, %s1308
                %p1314 = scmp.ge.s32.totalorder %s1313, %s1296
                %s1315 = scalar_select %p1314, 0, %s1313
                %s1316 = smul.u32 %s1315, 4
                %s1317 = smul.u32 %s1315, 4
                %s1318 = scalar_lea.vmem %s1299, %s1316 [#allocation2]
                %s1319 = scalar_lea.vmem %s1301, %s1317
              $region84: #{dan_forward.1} parent=71 // loop_footer
                %s1305 = sadd.s32 %s1303, 1
              $region85: #{dan_forward.1} parent=71 // loop_footer_branch
                %1302 = sbr.rel target = $region81
              $region86: #{dan_forward.1} parent=71 // loop_exit
                _
            $region72: #{dan_forward.1} parent=63 // pred_fallthru
              _
          $region64: #{dan_forward.1} parent=59 // pred_fallthru
            _
          %1373 = vnop
        $region60: #{dan_forward.1} parent=55 // pred_fallthru
          _
      $region56: #{dan_forward.1} parent=5 // pred_fallthru
        _
      %p1374 = scmp.le.s32.totalorder 2, %s15
      // Predicated region
      $region105: #{dan_forward.1} parent=5 // pred_check
        %p1375 = pneg %p1374
      $region106: #{dan_forward.1} parent=5 // pred_check_branch
        %1377 = sbr.rel (%p1375) target = $region108
      $region107: #{dan_forward.1} parent=5 // pred_region
        %s1378 = ssub.s32 %s15, 2
        // Predicated region
        $region109: #{dan_forward.1} parent=107 // pred_check
          %p1379 = pneg %p238
        $region110: #{dan_forward.1} parent=107 // pred_check_branch
          %1381 = sbr.rel (%p1379) target = $region112
        $region111: #{dan_forward.1} parent=107 // pred_region
          %s1382 = sand.u32 %s223, 1
          %s1383 = sand.u32 %s223, 1
          %s1384 = smul.addr %s1383, 16
          %s1385 = scalar_lea.vmem [#allocation2], %s1384
        $region112: #{dan_forward.1} parent=107 // pred_fallthru
          _
      $region108: #{dan_forward.1} parent=5 // pred_fallthru
        _
    $region6: #{dan_forward.1} parent=1 // loop_footer
      %s19 = sadd.s32 1, %s15
    $region7: #{dan_forward.1} parent=1 // loop_footer_branch
      %14 = sbr.rel target = $region3
    $region8: #{dan_forward.1} parent=1 // loop_exit
      _

</llo_original>
